<compile_context>
chip_gen: v6e
topology: v6e:2x2x1
jax: 0.10.0
libtpu: 0.0.40
codegen_flags: <defaults>
</compile_context>

<pallas_src>
import functools

import jax
import jax.numpy as jnp
from jax.experimental import pallas as pl
from jax.experimental.pallas import tpu as pltpu


def _focal_kernel(x_ref, t_ref, out_ref, *, num_class, gamma, smooth,
                  alpha_vec, block_rows, hw_total, mask_last):
    # x_ref: (1, C, R, 128)   logits tile (classes on a short leading axis)
    # t_ref: (1, R, 128)      integer class ids
    # out_ref: (1, 1, 8, 128) per-tile partial loss sum (lane-dense store)
    j = pl.program_id(1)

    tgt = t_ref[0].astype(jnp.int32)                        # (R, 128)

    # Pass 1: running max over classes — plain VPU max of C dense slabs.
    m = x_ref[0, 0].astype(jnp.float32)
    for c in range(1, num_class):
        m = jnp.maximum(m, x_ref[0, c].astype(jnp.float32))

    # Pass 2: softmax denominator, target-class numerator, per-pixel alpha.
    sum_e = None
    e_tgt = None
    a_row = None
    for c in range(num_class):
        e_c = jnp.exp(x_ref[0, c].astype(jnp.float32) - m)  # (R, 128)
        sum_e = e_c if sum_e is None else sum_e + e_c
        hit = tgt == c
        sel = jnp.where(hit, e_c, 0.0)
        e_tgt = sel if e_tgt is None else e_tgt + sel
        if alpha_vec is not None:
            a_c = jnp.where(hit, jnp.float32(alpha_vec[c]), jnp.float32(0.0))
            a_row = a_c if a_row is None else a_row + a_c

    # p_tgt = e_tgt / sum_e via EUP reciprocal + one Newton step (f32 accuracy,
    # keeps the rtol=1e-4 check safe while using the otherwise-idle EUP slot).
    inv = pl.reciprocal(sum_e, approx=True)
    inv = inv * (2.0 - sum_e * inv)
    p_tgt = e_tgt * inv                                      # (R, 128)

    # clamp(one_hot, lo, hi) . softmax  ==  lo + (hi - lo) * p_tgt   (rows sum to 1)
    lo = smooth / (num_class - 1) if num_class > 1 else 0.0
    hi = 1.0 - smooth
    pt = lo + (hi - lo) * p_tgt + smooth
    logpt = jnp.log(pt)

    omp = 1.0 - pt
    g = float(gamma)
    if g == 0.0:
        focal = jnp.ones_like(omp)
    elif g.is_integer() and 0 < int(g) <= 8:
        focal = omp                                          # gamma-1 multiplies
        for _ in range(int(g) - 1):
            focal = focal * omp
    else:
        focal = jnp.power(jnp.maximum(omp, 0.0), g)

    loss = -focal * logpt                                    # (R, 128)
    if a_row is not None:
        loss = a_row * loss

    if mask_last:
        last = pl.num_programs(1) - 1

        @pl.when(j == last)
        def _():
            row = jax.lax.broadcasted_iota(jnp.int32, (block_rows, 128), 0)
            lane = jax.lax.broadcasted_iota(jnp.int32, (block_rows, 128), 1)
            pos = (j * block_rows + row) * 128 + lane
            masked = jnp.where(pos < hw_total, loss, 0.0)
            out_ref[...] = jnp.broadcast_to(jnp.sum(masked), out_ref.shape)

        @pl.when(j != last)
        def _():
            out_ref[...] = jnp.broadcast_to(jnp.sum(loss), out_ref.shape)
    else:
        out_ref[...] = jnp.broadcast_to(jnp.sum(loss), out_ref.shape)


def focal_loss_pallas(logits_nchw, target, *, gamma=2.0, smooth=1e-5,
                      alpha=None, balance_index=0, size_average=True,
                      tile_rows=512):
    """Focal-loss forward matching the PyTorch FocalLoss module semantics."""
    N, C, H, W = logits_nchw.shape
    HW = H * W
    M = N * HW
    LANES = 128

    smooth = 0.0 if smooth is None else float(smooth)
    if smooth < 0.0 or smooth > 1.0:
        raise ValueError("smooth value should be in [0,1]")

    # --- alpha baked as compile-time constants (mirrors the torch module) ---
    if alpha is None:
        alpha_vec = None
    elif isinstance(alpha, float):
        v = [1.0 - alpha] * C                    # torch float path: NO renormalization
        v[balance_index] = alpha
        alpha_vec = tuple(v)
    else:
        a = [float(x) for x in alpha]
        assert len(a) == C
        s = sum(a)
        alpha_vec = tuple(x / s for x in a)      # torch list path: renormalized

    # --- layout: spatial axis -> dense (rows, 128) sublane x lane tiles ---
    HW128 = pl.cdiv(HW, LANES)
    HW_pad = HW128 * LANES

    x = logits_nchw.reshape(N, C, HW)
    t = target.reshape(N, HW)
    if t.dtype not in (jnp.dtype(jnp.int8), jnp.dtype(jnp.uint8)):
        t = t.astype(jnp.int32)                  # keep caller-supplied compact dtypes
    if HW_pad != HW:                             # pad copy only for non-128-aligned HW
        x = jnp.pad(x, ((0, 0), (0, 0), (0, HW_pad - HW)))
        t = jnp.pad(t, ((0, 0), (0, HW_pad - HW)))
    x = x.reshape(N, C, HW128, LANES)            # free split of the contiguous last axis
    t = t.reshape(N, HW128, LANES)

    # --- padding-aware VMEM sizing (f32/bf16 logits, int8/int32 targets) ---
    ROW_ALIGN = 32                               # multiple of 8 (f32) / 16 (bf16) / 32 (int8)
    x_item = jnp.dtype(x.dtype).itemsize
    t_item = jnp.dtype(t.dtype).itemsize
    x_sub = {4: 8, 2: 16, 1: 32}.get(x_item, 8)
    t_sub = {4: 8, 2: 16, 1: 32}.get(t_item, 8)
    c_pad = pl.cdiv(C, x_sub) * x_sub

    def _block_bytes(r):                         # double-buffered pipeline buffers
        x_blk = c_pad * r * LANES * x_item
        t_blk = max(pl.cdiv(r, t_sub) * t_sub, t_sub) * LANES * t_item
        o_blk = 8 * LANES * 4
        return 2 * (x_blk + t_blk + o_blk)

    budget = 6 * 1024 * 1024                     # stays well under v5e's 16 MiB scoped default
    per_row = 2 * (c_pad * LANES * x_item + LANES * t_item)
    r_cap = max(ROW_ALIGN, (budget // per_row) // ROW_ALIGN * ROW_ALIGN)
    R = min(int(tile_rows), r_cap)
    if HW128 <= R:
        R = HW128                                # full-extent block: always a legal shape
    else:
        R = max(ROW_ALIGN, (R // ROW_ALIGN) * ROW_ALIGN)

    # v7x megacore: prefer splitting the spatial grid over one huge tile when N is tiny.
    min_steps = 4
    if HW128 > ROW_ALIGN and N * pl.cdiv(HW128, R) < min_steps:
        per_n = pl.cdiv(min_steps, N)
        R = min(R, max(ROW_ALIGN, (HW128 // per_n) // ROW_ALIGN * ROW_ALIGN))

    grid_r = pl.cdiv(HW128, R)
    mask_last = (HW_pad != HW) or (HW128 % R != 0)

    kernel = functools.partial(
        _focal_kernel, num_class=C, gamma=float(gamma), smooth=smooth,
        alpha_vec=alpha_vec, block_rows=R, hw_total=HW, mask_last=mask_last)

    # block buffers + headroom for in-kernel f32 temporaries
    est = _block_bytes(R) + 8 * R * LANES * 4
    vmem_limit = int(max(16 * 1024 * 1024, est + (2 << 20)))

    partials = pl.pallas_call(
        kernel,
        out_shape=jax.ShapeDtypeStruct((N, grid_r, 8, LANES), jnp.float32),
        grid_spec=pltpu.PrefetchScalarGridSpec(
            num_scalar_prefetch=0,
            grid=(N, grid_r),
            in_specs=[
                pl.BlockSpec((1, C, R, LANES), lambda n, j: (n, 0, j, 0)),
                pl.BlockSpec((1, R, LANES), lambda n, j: (n, j, 0)),
            ],
            out_specs=pl.BlockSpec((1, 1, 8, LANES), lambda n, j: (n, j, 0, 0)),
        ),
        compiler_params=pltpu.CompilerParams(
            dimension_semantics=("parallel", "parallel"),
            vmem_limit_bytes=vmem_limit),
    )(x, t)

    total = jnp.sum(partials[:, :, 0, 0])
    if size_average:
        return total / jnp.float32(M)
    return total


def focal_loss_ref(logits_nchw, target, *, gamma=2.0, smooth=1e-5, alpha=None,
                   balance_index=0):
    """Pure-JAX reference mirroring the PyTorch forward (list and float alpha)."""
    N, C, H, W = logits_nchw.shape
    p = jax.nn.softmax(logits_nchw.astype(jnp.float32), axis=1)
    p = jnp.transpose(p, (0, 2, 3, 1)).reshape(-1, C)
    t = target.reshape(-1).astype(jnp.int32)
    oh = jax.nn.one_hot(t, C, dtype=jnp.float32)
    oh = jnp.clip(oh, smooth / (C - 1), 1.0 - smooth)
    pt = jnp.sum(oh * p, axis=1) + smooth
    if alpha is None:
        a_row = 1.0
    elif isinstance(alpha, float):
        a = jnp.full((C,), 1.0 - alpha, dtype=jnp.float32)
        a = a.at[balance_index].set(alpha)
        a_row = a[t]
    else:
        a = jnp.asarray(alpha, dtype=jnp.float32)
        a = a / jnp.sum(a)
        a_row = a[t]
    loss = -a_row * jnp.power(1.0 - pt, gamma) * jnp.log(pt)
    return jnp.mean(loss)


if __name__ == "__main__":
    key = jax.random.PRNGKey(0)
    k1, k2, k3, k4, k5, k6 = jax.random.split(key, 6)

    # 1) default config, 128-aligned spatial extent, single tile per batch element
    N, C, H, W = 2, 4, 16, 16
    logits = jax.random.normal(k1, (N, C, H, W), dtype=jnp.float32)
    target = jax.random.randint(k2, (N, 1, H, W), 0, C, dtype=jnp.int32)
    out = jax.block_until_ready(focal_loss_pallas(logits, target))
    ref = focal_loss_ref(logits, target)
    assert jnp.allclose(out, ref, rtol=1e-4, atol=1e-5), (out, ref)

    # 2) multi-tile spatial grid with a ragged last row-tile, list alpha, int8 targets
    N2, C2, H2, W2 = 2, 4, 112, 112            # HW=12544 -> 98 rows of 128; tile_rows=32 -> 4 tiles
    logits2 = jax.random.normal(k3, (N2, C2, H2, W2), dtype=jnp.float32)
    target2 = jax.random.randint(k4, (N2, 1, H2, W2), 0, C2,
                                 dtype=jnp.int32).astype(jnp.int8)
    alpha2 = [1.0, 2.0, 0.5, 1.5]
    out2 = jax.block_until_ready(
        focal_loss_pallas(logits2, target2, alpha=alpha2, tile_rows=32))
    ref2 = focal_loss_ref(logits2, target2, alpha=alpha2)
    assert jnp.allclose(out2, ref2, rtol=1e-4, atol=1e-5), (out2, ref2)

    # 3) non-128-aligned spatial extent (wrapper pad + masked tail) and float alpha
    N3, C3, H3, W3 = 2, 4, 10, 30              # HW=300 -> padded to 384
    logits3 = jax.random.normal(k5, (N3, C3, H3, W3), dtype=jnp.float32)
    target3 = jax.random.randint(k6, (N3, 1, H3, W3), 0, C3, dtype=jnp.int32)
    out3 = jax.block_until_ready(
        focal_loss_pallas(logits3, target3, alpha=0.6, balance_index=2))
    ref3 = focal_loss_ref(logits3, target3, alpha=0.6, balance_index=2)
    assert jnp.allclose(out3, ref3, rtol=1e-4, atol=1e-5), (out3, ref3)

    print("KERNEL_OK")
</pallas_src>

<mosaic_0001>
module attributes {stable_mosaic.version = 11 : i64} {
  func.func @_focal_kernel(%arg0: i32, %arg1: i32, %arg2: memref<1x4x2x128xf32, #tpu.memory_space<vmem>>, %arg3: memref<1x2x128xi32, #tpu.memory_space<vmem>>, %arg4: memref<1x1x8x128xf32, #tpu.memory_space<vmem>>) attributes {dimension_semantics = [#tpu.dimension_semantics<parallel>, #tpu.dimension_semantics<parallel>], iteration_bounds = array<i64: 2, 1>, scalar_prefetch = 0 : i64, scratch_operands = 0 : i64, tpu.core_type = #tpu.core_type<tc>, window_params = [{transform_indices = @transform_0, window_bounds = array<i64: 1, 4, 2, 128>}, {transform_indices = @transform_1, window_bounds = array<i64: 1, 2, 128>}, {transform_indices = @transform_2, window_bounds = array<i64: 1, 1, 8, 128>}]} {
    %c0 = arith.constant 0 : index
    %c0_0 = arith.constant 0 : index
    %c0_1 = arith.constant 0 : index
    %0 = vector.load %arg3[%c0, %c0_0, %c0_1] : memref<1x2x128xi32, #tpu.memory_space<vmem>>, vector<1x2x128xi32>
    %1 = vector.shape_cast %0 : vector<1x2x128xi32> to vector<2x128xi32>
    %c0_2 = arith.constant 0 : index
    %c0_3 = arith.constant 0 : index
    %c0_4 = arith.constant 0 : index
    %c0_5 = arith.constant 0 : index
    %2 = vector.load %arg2[%c0_2, %c0_3, %c0_4, %c0_5] : memref<1x4x2x128xf32, #tpu.memory_space<vmem>>, vector<1x1x2x128xf32>
    %3 = vector.shape_cast %2 : vector<1x1x2x128xf32> to vector<2x128xf32>
    %c0_6 = arith.constant 0 : index
    %c1 = arith.constant 1 : index
    %c0_7 = arith.constant 0 : index
    %c0_8 = arith.constant 0 : index
    %4 = vector.load %arg2[%c0_6, %c1, %c0_7, %c0_8] : memref<1x4x2x128xf32, #tpu.memory_space<vmem>>, vector<1x1x2x128xf32>
    %5 = vector.shape_cast %4 : vector<1x1x2x128xf32> to vector<2x128xf32>
    %6 = arith.maximumf %3, %5 : vector<2x128xf32>
    %c0_9 = arith.constant 0 : index
    %c2 = arith.constant 2 : index
    %c0_10 = arith.constant 0 : index
    %c0_11 = arith.constant 0 : index
    %7 = vector.load %arg2[%c0_9, %c2, %c0_10, %c0_11] : memref<1x4x2x128xf32, #tpu.memory_space<vmem>>, vector<1x1x2x128xf32>
    %8 = vector.shape_cast %7 : vector<1x1x2x128xf32> to vector<2x128xf32>
    %9 = arith.maximumf %6, %8 : vector<2x128xf32>
    %c0_12 = arith.constant 0 : index
    %c3 = arith.constant 3 : index
    %c0_13 = arith.constant 0 : index
    %c0_14 = arith.constant 0 : index
    %10 = vector.load %arg2[%c0_12, %c3, %c0_13, %c0_14] : memref<1x4x2x128xf32, #tpu.memory_space<vmem>>, vector<1x1x2x128xf32>
    %11 = vector.shape_cast %10 : vector<1x1x2x128xf32> to vector<2x128xf32>
    %12 = arith.maximumf %9, %11 : vector<2x128xf32>
    %c0_15 = arith.constant 0 : index
    %c0_16 = arith.constant 0 : index
    %c0_17 = arith.constant 0 : index
    %c0_18 = arith.constant 0 : index
    %13 = vector.load %arg2[%c0_15, %c0_16, %c0_17, %c0_18] : memref<1x4x2x128xf32, #tpu.memory_space<vmem>>, vector<1x1x2x128xf32>
    %14 = vector.shape_cast %13 : vector<1x1x2x128xf32> to vector<2x128xf32>
    %15 = arith.subf %14, %12 : vector<2x128xf32>
    %16 = math.exp %15 : vector<2x128xf32>
    %c0_i32 = arith.constant 0 : i32
    %17 = vector.broadcast %c0_i32 : i32 to vector<2x128xi32>
    %18 = arith.cmpi eq, %1, %17 : vector<2x128xi32>
    %cst = arith.constant 0.000000e+00 : f32
    %19 = vector.broadcast %cst : f32 to vector<2x128xf32>
    %20 = arith.select %18, %16, %19 : vector<2x128xi1>, vector<2x128xf32>
    %c0_19 = arith.constant 0 : index
    %c1_20 = arith.constant 1 : index
    %c0_21 = arith.constant 0 : index
    %c0_22 = arith.constant 0 : index
    %21 = vector.load %arg2[%c0_19, %c1_20, %c0_21, %c0_22] : memref<1x4x2x128xf32, #tpu.memory_space<vmem>>, vector<1x1x2x128xf32>
    %22 = vector.shape_cast %21 : vector<1x1x2x128xf32> to vector<2x128xf32>
    %23 = arith.subf %22, %12 : vector<2x128xf32>
    %24 = math.exp %23 : vector<2x128xf32>
    %25 = arith.addf %16, %24 : vector<2x128xf32>
    %c1_i32 = arith.constant 1 : i32
    %26 = vector.broadcast %c1_i32 : i32 to vector<2x128xi32>
    %27 = arith.cmpi eq, %1, %26 : vector<2x128xi32>
    %cst_23 = arith.constant 0.000000e+00 : f32
    %28 = vector.broadcast %cst_23 : f32 to vector<2x128xf32>
    %29 = arith.select %27, %24, %28 : vector<2x128xi1>, vector<2x128xf32>
    %30 = arith.addf %20, %29 : vector<2x128xf32>
    %c0_24 = arith.constant 0 : index
    %c2_25 = arith.constant 2 : index
    %c0_26 = arith.constant 0 : index
    %c0_27 = arith.constant 0 : index
    %31 = vector.load %arg2[%c0_24, %c2_25, %c0_26, %c0_27] : memref<1x4x2x128xf32, #tpu.memory_space<vmem>>, vector<1x1x2x128xf32>
    %32 = vector.shape_cast %31 : vector<1x1x2x128xf32> to vector<2x128xf32>
    %33 = arith.subf %32, %12 : vector<2x128xf32>
    %34 = math.exp %33 : vector<2x128xf32>
    %35 = arith.addf %25, %34 : vector<2x128xf32>
    %c2_i32 = arith.constant 2 : i32
    %36 = vector.broadcast %c2_i32 : i32 to vector<2x128xi32>
    %37 = arith.cmpi eq, %1, %36 : vector<2x128xi32>
    %cst_28 = arith.constant 0.000000e+00 : f32
    %38 = vector.broadcast %cst_28 : f32 to vector<2x128xf32>
    %39 = arith.select %37, %34, %38 : vector<2x128xi1>, vector<2x128xf32>
    %40 = arith.addf %30, %39 : vector<2x128xf32>
    %c0_29 = arith.constant 0 : index
    %c3_30 = arith.constant 3 : index
    %c0_31 = arith.constant 0 : index
    %c0_32 = arith.constant 0 : index
    %41 = vector.load %arg2[%c0_29, %c3_30, %c0_31, %c0_32] : memref<1x4x2x128xf32, #tpu.memory_space<vmem>>, vector<1x1x2x128xf32>
    %42 = vector.shape_cast %41 : vector<1x1x2x128xf32> to vector<2x128xf32>
    %43 = arith.subf %42, %12 : vector<2x128xf32>
    %44 = math.exp %43 : vector<2x128xf32>
    %45 = arith.addf %35, %44 : vector<2x128xf32>
    %c3_i32 = arith.constant 3 : i32
    %46 = vector.broadcast %c3_i32 : i32 to vector<2x128xi32>
    %47 = arith.cmpi eq, %1, %46 : vector<2x128xi32>
    %cst_33 = arith.constant 0.000000e+00 : f32
    %48 = vector.broadcast %cst_33 : f32 to vector<2x128xf32>
    %49 = arith.select %47, %44, %48 : vector<2x128xi1>, vector<2x128xf32>
    %50 = arith.addf %40, %49 : vector<2x128xf32>
    %51 = tpu.reciprocal %45 {approx = true} : vector<2x128xf32> -> vector<2x128xf32>
    %52 = arith.mulf %45, %51 : vector<2x128xf32>
    %cst_34 = arith.constant 2.000000e+00 : f32
    %53 = vector.broadcast %cst_34 : f32 to vector<2x128xf32>
    %54 = arith.subf %53, %52 : vector<2x128xf32>
    %55 = arith.mulf %51, %54 : vector<2x128xf32>
    %56 = arith.mulf %50, %55 : vector<2x128xf32>
    %cst_35 = arith.constant 0.999986648 : f32
    %57 = vector.broadcast %cst_35 : f32 to vector<2x128xf32>
    %58 = arith.mulf %57, %56 : vector<2x128xf32>
    %cst_36 = arith.constant 3.33333332E-6 : f32
    %59 = vector.broadcast %cst_36 : f32 to vector<2x128xf32>
    %60 = arith.addf %59, %58 : vector<2x128xf32>
    %cst_37 = arith.constant 9.99999974E-6 : f32
    %61 = vector.broadcast %cst_37 : f32 to vector<2x128xf32>
    %62 = arith.addf %60, %61 : vector<2x128xf32>
    %63 = math.log %62 : vector<2x128xf32>
    %cst_38 = arith.constant 1.000000e+00 : f32
    %64 = vector.broadcast %cst_38 : f32 to vector<2x128xf32>
    %65 = arith.subf %64, %62 : vector<2x128xf32>
    %66 = arith.mulf %65, %65 : vector<2x128xf32>
    %cst_39 = arith.constant 0.000000e+00 : f32
    %67 = vector.broadcast %cst_39 : f32 to vector<2x128xf32>
    %68 = arith.subf %67, %66 : vector<2x128xf32>
    %69 = arith.mulf %68, %63 : vector<2x128xf32>
    %70 = vector.shape_cast %69 : vector<2x128xf32> to vector<1x2x128xf32>
    %cst_40 = arith.constant dense<0.000000e+00> : vector<1xf32>
    %71 = vector.multi_reduction <add>, %70, %cst_40 [1, 2] : vector<1x2x128xf32> to vector<1xf32>
    %72 = vector.shape_cast %71 : vector<1xf32> to vector<1x1x1xf32>
    %73 = vector.extract %72[0, 0, 0] : f32 from vector<1x1x1xf32>
    %74 = vector.broadcast %73 : f32 to vector<1x1x8x128xf32>
    %c0_41 = arith.constant 0 : index
    %c0_42 = arith.constant 0 : index
    %c0_43 = arith.constant 0 : index
    %c0_44 = arith.constant 0 : index
    %75 = vector.load %arg4[%c0_41, %c0_42, %c0_43, %c0_44] : memref<1x1x8x128xf32, #tpu.memory_space<vmem>>, vector<1x1x8x128xf32>
    tpu.vector_store %arg4[%c0_41, %c0_42, %c0_43, %c0_44], %74 {strides = array<i32>} : memref<1x1x8x128xf32, #tpu.memory_space<vmem>>, vector<1x1x8x128xf32>,
    return
  }
  func.func @transform_0(%arg0: i32, %arg1: i32) -> (i32, i32, i32, i32) {
    %c0_i32 = arith.constant 0 : i32
    %c0_i32_0 = arith.constant 0 : i32
    %c0_i32_1 = arith.constant 0 : i32
    return %arg0, %c0_i32, %arg1, %c0_i32_0 : i32, i32, i32, i32
  }
  func.func @transform_1(%arg0: i32, %arg1: i32) -> (i32, i32, i32) {
    %c0_i32 = arith.constant 0 : i32
    %c0_i32_0 = arith.constant 0 : i32
    return %arg0, %arg1, %c0_i32 : i32, i32, i32
  }
  func.func @transform_2(%arg0: i32, %arg1: i32) -> (i32, i32, i32, i32) {
    %c0_i32 = arith.constant 0 : i32
    %c0_i32_0 = arith.constant 0 : i32
    %c0_i32_1 = arith.constant 0 : i32
    return %arg0, %arg1, %c0_i32, %c0_i32_0 : i32, i32, i32, i32
  }
}

</mosaic_0001>

<llo_original>
// kernel: tpu_custom_call.1
$region0: #{tpu_custom_call.1}
  #allocation0 [shape = 'u32[]', space=smem, size = 0x4, offset = 0x4, fixed_abs, tag = 'smem constant byte address 0x4 - core index']
  #allocation1 [shape = 'u32[144,128]{1,0:T(1,128)}', space=vmem, size = 0x12000, scoped, tag = 'internal scratch']
  %s0 = inlined_call_operand.hbm [shape: f32[2,4,2,128], index: 0, kind: input, shape index: {}]
  %s1 = inlined_call_operand.hbm [shape: s32[2,2,128], index: 1, kind: input, shape index: {}]
  %s2 = inlined_call_operand.hbm [shape: f32[2,1,8,128], index: 2, kind: output, shape index: {}]
  %s3 = sld [smem:[#allocation0]]
  $region49: #{tpu_custom_call.1} parent=0
    _
  %s5 = ssub.s32 1, %s3
  %s6 = scalar_select 0, %s5, %s3
  $region1: #{tpu_custom_call.1} parent=0
    #allocation2 [shape = 'u8[8192]{0}', space=vmem, size = 0x2000, scoped, tag = 'input window, operand 0']
    #allocation3 [shape = 's32[2]{0}', space=sflag, size = 0x8, scoped, tag = 'scoped memory for tpu_custom_call.1']
    #allocation4 [shape = 's32[2]{0}', space=sflag, size = 0x8, scoped, tag = 'scoped memory for tpu_custom_call.1']
    #allocation5 [shape = 'u8[2048]{0}', space=vmem, size = 0x800, scoped, tag = 'input window, operand 1']
    #allocation6 [shape = 's32[2]{0}', space=sflag, size = 0x8, scoped, tag = 'scoped memory for tpu_custom_call.1']
    #allocation7 [shape = 'u8[8192]{0}', space=vmem, size = 0x2000, scoped, tag = 'output window, operand 0']
    %7 = vsyncpa [#allocation3], 0
    %s8 = scalar_lea.sflag [#allocation3], 1
    %9 = vsyncpa %s8, 0
    %10 = vsyncpa [#allocation6], 0
    %s11 = scalar_lea.sflag [#allocation6], 1
    %12 = vsyncpa %s11, 0
    %13 = vsyncpa [#allocation4], 0
    %s14 = scalar_lea.sflag [#allocation4], 1
    %15 = vsyncpa %s14, 0
    loop: start=0, step=1, limit=4
    $region2: #{tpu_custom_call.1} parent=1 // loop_pre_header
      _
    $region3: #{tpu_custom_call.1} parent=1 // loop_header
      %s17 = sphi 0, %s21
      %p18 = scmp.ge.s32.totalorder %s17, 4
      %s24 = sphi 0, %s36
      %s25 = sphi 0, %s32
      %s26 = sphi 0, %s24
      %s27 = sphi 0, %s25
      %s28 = sphi 0, %s26
      %s29 = sphi 0, %s27
      %s41 = sphi 0, %s43
      %s44 = sphi 0, %s41
      %s45 = sphi 0, %s44
      %s61 = sphi 0, %s45
      %s69 = sphi 0, %s71
      %s72 = sphi 0, %s69
      %s73 = sphi 0, %s72
      %s89 = sphi 0, %s73
      %s97 = sphi 0, %s99
      %s100 = sphi 0, %s97
      %s101 = sphi 0, %s100
      %s117 = sphi 0, %s101
    $region4: #{tpu_custom_call.1} parent=1 // loop_header_branch
      %20 = sbr.rel (%p18) target = $region8
    $region5: #{tpu_custom_call.1} parent=1 // loop_body
      %s22 = ssub.s32 %s17, 1
      %s23 = ssub.s32 %s17, 2
      %s30 = sadd.s32 1, %s25
      %p31 = scmp.ge.s32.totalorder %s30, 1
      %s32 = scalar_select %p31, 0, %s30
      %s33 = sadd.s32 1, %s24
      %s34 = scalar_select %p31, %s33, %s24
      %p35 = scmp.ge.s32.totalorder %s34, 2
      %s36 = scalar_select %p35, 0, %s34
      %s37 = ssub.s32 %s24, %s36
      %s38 = ssub.s32 %s25, %s32
      %s39 = sor.u32 %s37, %s38
      %p40 = scmp.eq.s32.totalorder %s39, 0
      %s42 = sadd.s32 %s41, 1
      %s43 = scalar_select %p40, %s41, %s42
      %p46 = pneg %p40
      %p47 = scmp.eq.s32.totalorder %s17, 1
      %p48 = por %p46, %p47
      %p49 = scmp.ne.s32.totalorder %s41, %s44
      %p50 = scmp.eq.s32.totalorder %s17, 0
      %p51 = por %p49, %p50
      %p52 = scmp.ne.s32.totalorder %s41, %s44
      %p53 = scmp.eq.s32.totalorder %s22, 1
      %p54 = por %p52, %p53
      %p55 = scmp.ne.s32.totalorder %s44, %s45
      %p56 = scmp.eq.s32.totalorder %s22, 0
      %p57 = por %p55, %p56
      %p58 = scmp.ne.s32.totalorder %s44, %s45
      %p59 = scmp.eq.s32.totalorder %s23, 1
      %p60 = por %p58, %p59
      %p62 = scmp.ne.s32.totalorder %s45, %s61
      %p63 = scmp.eq.s32.totalorder %s23, 0
      %p64 = por %p62, %p63
      %s65 = ssub.s32 %s24, %s36
      %s66 = ssub.s32 %s25, %s32
      %s67 = sor.u32 %s65, %s66
      %p68 = scmp.eq.s32.totalorder %s67, 0
      %s70 = sadd.s32 %s69, 1
      %s71 = scalar_select %p68, %s69, %s70
      %p74 = pneg %p68
      %p75 = scmp.eq.s32.totalorder %s17, 1
      %p76 = por %p74, %p75
      %p77 = scmp.ne.s32.totalorder %s69, %s72
      %p78 = scmp.eq.s32.totalorder %s17, 0
      %p79 = por %p77, %p78
      %p80 = scmp.ne.s32.totalorder %s69, %s72
      %p81 = scmp.eq.s32.totalorder %s22, 1
      %p82 = por %p80, %p81
      %p83 = scmp.ne.s32.totalorder %s72, %s73
      %p84 = scmp.eq.s32.totalorder %s22, 0
      %p85 = por %p83, %p84
      %p86 = scmp.ne.s32.totalorder %s72, %s73
      %p87 = scmp.eq.s32.totalorder %s23, 1
      %p88 = por %p86, %p87
      %p90 = scmp.ne.s32.totalorder %s73, %s89
      %p91 = scmp.eq.s32.totalorder %s23, 0
      %p92 = por %p90, %p91
      %s93 = ssub.s32 %s24, %s36
      %s94 = ssub.s32 %s25, %s32
      %s95 = sor.u32 %s93, %s94
      %p96 = scmp.eq.s32.totalorder %s95, 0
      %s98 = sadd.s32 %s97, 1
      %s99 = scalar_select %p96, %s97, %s98
      %p102 = pneg %p96
      %p103 = scmp.eq.s32.totalorder %s17, 1
      %p104 = por %p102, %p103
      %p105 = scmp.ne.s32.totalorder %s97, %s100
      %p106 = scmp.eq.s32.totalorder %s17, 0
      %p107 = por %p105, %p106
      %p108 = scmp.ne.s32.totalorder %s97, %s100
      %p109 = scmp.eq.s32.totalorder %s22, 1
      %p110 = por %p108, %p109
      %p111 = scmp.ne.s32.totalorder %s100, %s101
      %p112 = scmp.eq.s32.totalorder %s22, 0
      %p113 = por %p111, %p112
      %p114 = scmp.ne.s32.totalorder %s100, %s101
      %p115 = scmp.eq.s32.totalorder %s23, 1
      %p116 = por %p114, %p115
      %p118 = scmp.ne.s32.totalorder %s101, %s117
      %p119 = scmp.eq.s32.totalorder %s23, 0
      %p120 = por %p118, %p119
      %p121 = scmp.le.s32.totalorder 1, %s17
      %p122 = scmp.lt.s32.totalorder %s17, 3
      %p123 = pnand %p121, %p122
      %p124 = pneg %p123
      // Predicated region
      $region9: #{tpu_custom_call.1} parent=5 // pred_check
        _
      $region10: #{tpu_custom_call.1} parent=5 // pred_check_branch
        %126 = sbr.rel (%p123) target = $region12
      $region11: #{tpu_custom_call.1} parent=5 // pred_region
        %s127 = ssub.s32 %s17, 1
      $region12: #{tpu_custom_call.1} parent=5 // pred_fallthru
        _
      %p128 = scmp.lt.s32.totalorder %s17, 2
      // Predicated region
      $region13: #{tpu_custom_call.1} parent=5 // pred_check
        %p129 = pneg %p128
      $region14: #{tpu_custom_call.1} parent=5 // pred_check_branch
        %131 = sbr.rel (%p129) target = $region16
      $region15: #{tpu_custom_call.1} parent=5 // pred_region
        // Predicated region
        $region17: #{tpu_custom_call.1} parent=15 // pred_check
          %p132 = pneg %p51
        $region18: #{tpu_custom_call.1} parent=15 // pred_check_branch
          %134 = sbr.rel (%p132) target = $region20
        $region19: #{tpu_custom_call.1} parent=15 // pred_region
          %s135 = sand.u32 %s41, 1
          %s136 = scalar_lea.sflag [#allocation3], %s135
          %s137 = sand.u32 %s41, 1
          %s138 = smul.addr %s137, 8
          %s139 = scalar_lea.vmem [#allocation2], %s138
          %s141 = ssub.s32 128, 128
          %142 = vsyncadd %s136, %s141
          %s143 = smul.addr %s24, 4
          %s144 = sadd.s32 %s25, %s143
          %s145 = smul.addr %s144, 32
          %s146 = scalar_lea.hbm %s0, %s145
          %s147 = sshll.u32 %s139, 4
          %s148 = int_to_ptr.vmem [resolvable:$true] %s147
          %153 = dma.hbm_to_vmem [thread:$0]  %s146, 128, %s148, %s136, 32, 32, 2
        $region20: #{tpu_custom_call.1} parent=15 // pred_fallthru
          _
        // Predicated region
        $region21: #{tpu_custom_call.1} parent=15 // pred_check
          %p154 = pneg %p79
        $region22: #{tpu_custom_call.1} parent=15 // pred_check_branch
          %156 = sbr.rel (%p154) target = $region24
        $region23: #{tpu_custom_call.1} parent=15 // pred_region
          %s157 = sand.u32 %s69, 1
          %s158 = scalar_lea.sflag [#allocation6], %s157
          %s159 = sand.u32 %s69, 1
          %s160 = smul.addr %s159, 2
          %s161 = scalar_lea.vmem [#allocation5], %s160
          %s163 = ssub.s32 32, 32
          %164 = vsyncadd %s158, %s163
          %s165 = sadd.s32 %s25, %s24
          %s166 = smul.addr %s165, 32
          %s167 = scalar_lea.hbm %s1, %s166
          %s169 = sshll.u32 %s161, 4
          %s170 = int_to_ptr.vmem [resolvable:$true] %s169
          %172 = dma.hbm_to_vmem [thread:$0]  %s167, 32, %s170, %s158
        $region24: #{tpu_custom_call.1} parent=15 // pred_fallthru
          _
      $region16: #{tpu_custom_call.1} parent=5 // pred_fallthru
        _
      %p173 = scmp.le.s32.totalorder 1, %s17
      %p174 = scmp.lt.s32.totalorder %s17, 3
      %p175 = pnand %p173, %p174
      %p176 = pneg %p175
      // Predicated region
      $region25: #{tpu_custom_call.1} parent=5 // pred_check
        _
      $region26: #{tpu_custom_call.1} parent=5 // pred_check_branch
        %178 = sbr.rel (%p175) target = $region28
      $region27: #{tpu_custom_call.1} parent=5 // pred_region
        %s179 = ssub.s32 %s17, 1
        %s180 = sand.u32 %s44, 1
        %s181 = scalar_lea.sflag [#allocation3], %s180
        %s182 = sand.u32 %s44, 1
        %s183 = smul.addr %s182, 8
        %s184 = scalar_lea.vmem [#allocation2], %s183
        // Predicated region
        $region29: #{tpu_custom_call.1} parent=27 // pred_check
          %p185 = pneg %p57
        $region30: #{tpu_custom_call.1} parent=27 // pred_check_branch
          %187 = sbr.rel (%p185) target = $region32
        $region31: #{tpu_custom_call.1} parent=27 // pred_region
          %188 = dma.done %s181, 128
        $region32: #{tpu_custom_call.1} parent=27 // pred_fallthru
          _
        %s189 = sand.u32 %s72, 1
        %s190 = scalar_lea.sflag [#allocation6], %s189
        %s191 = sand.u32 %s72, 1
        %s192 = smul.addr %s191, 2
        %s193 = scalar_lea.vmem [#allocation5], %s192
        // Predicated region
        $region33: #{tpu_custom_call.1} parent=27 // pred_check
          %p194 = pneg %p85
        $region34: #{tpu_custom_call.1} parent=27 // pred_check_branch
          %196 = sbr.rel (%p194) target = $region36
        $region35: #{tpu_custom_call.1} parent=27 // pred_region
          %197 = dma.done %s190, 32
        $region36: #{tpu_custom_call.1} parent=27 // pred_fallthru
          _
        %s198 = sand.u32 %s44, 1
        %s199 = scalar_lea.sflag [#allocation3], %s198
        %s200 = sand.u32 %s44, 1
        %s201 = smul.addr %s200, 8
        %s202 = scalar_lea.vmem [#allocation2], %s201
        %p203 = pneg %p57
        %p204 = pneg %p54
        %s205 = sand.u32 %s72, 1
        %s206 = scalar_lea.sflag [#allocation6], %s205
        %s207 = sand.u32 %s72, 1
        %s208 = smul.addr %s207, 2
        %s209 = scalar_lea.vmem [#allocation5], %s208
        %p210 = pneg %p85
        %p211 = pneg %p82
        %p212 = pneg %p113
        %p213 = pneg %p110
        %s214 = sand.u32 %s100, 1
        %s215 = scalar_lea.sflag [#allocation4], %s214
        %s216 = sand.u32 %s100, 1
        %s217 = smul.addr %s216, 8
        %s218 = scalar_lea.vmem [#allocation7], %s217
        %v219 = vld [vmem:[%s193] sm:$0x3]
        %v220 = vld [vmem:[%s184] sm:$0x3]
        %s221 = scalar_lea.vmem %s184, 2 [#allocation2]
        %v222 = vld [vmem:[%s221] sm:$0x3]
        %v223 = vmax.f32 %v220, %v222
        %s224 = scalar_lea.vmem %s184, 4 [#allocation2]
        %v225 = vld [vmem:[%s224] sm:$0x3]
        %v226 = vmax.f32 %v223, %v225
        %s227 = scalar_lea.vmem %s184, 6 [#allocation2]
        %v228 = vld [vmem:[%s227] sm:$0x3]
        %v229 = vmax.f32 %v226, %v228
        %v230 = vsub.f32 %v220, %v229
        %v231 = vmul.f32 %v230, 1.442695
        %v232 = vpow.pop %v231
        %vm233 = vcmp.eq.s32.totalorder %v219, 0
        %v234 = vsel %vm233, %v232, 0.0
        %v235 = vsub.f32 %v222, %v229
        %v236 = vmul.f32 %v235, 1.442695
        %v237 = vpow.pop %v236
        %v238 = vadd.f32 %v232, %v237
        %vm239 = vcmp.eq.s32.totalorder %v219, 1
        %v240 = vsel %vm239, %v237, 0.0
        %v241 = vadd.f32 %v234, %v240
        %v242 = vsub.f32 %v225, %v229
        %v243 = vmul.f32 %v242, 1.442695
        %v244 = vpow.pop %v243
        %v245 = vadd.f32 %v238, %v244
        %vm246 = vcmp.eq.s32.totalorder %v219, 2
        %v247 = vsel %vm246, %v244, 0.0
        %v248 = vadd.f32 %v241, %v247
        %v249 = vsub.f32 %v228, %v229
        %v250 = vmul.f32 %v249, 1.442695
        %v251 = vpow.pop %v250
        %v252 = vadd.f32 %v245, %v251
        %vm253 = vcmp.eq.s32.totalorder %v219, 3
        %v254 = vsel %vm253, %v251, 0.0
        %v255 = vadd.f32 %v248, %v254
        %v256 = vrcp.pop %v252
        %v257 = vmul.f32 %v252, %v256
        %v258 = vsub.f32 2.0, %v257
        %v259 = vmul.f32 %v256, %v258
        %v260 = vmul.f32 %v255, %v259
        %v261 = vmul.f32 %v260, 0.99998665
        %v262 = vadd.f32 %v261, 3.3333333e-06
        %v263 = vadd.f32 %v262, 1e-05
        %v264 = vlog2.pop %v263
        %v265 = vmul.f32 %v264, 0.6931472
        %v266 = vsub.f32 1.0, %v263
        %v267 = vmul.f32 %v266, %v266
        %v268 = vsub.f32 0.0, %v267
        %v269 = vmul.f32 %v268, %v265
        %vm270 = vcmask 1041408
        %v271 = vsel %vm270, %v269, 0.0
        %272 = vadd.xlane.f32.xlu0 %v271
        %v273 = vpop.xlane.xlu0 %272
        %v274 = vrot.slane %v273, 4
        %v275 = vadd.f32 %v273, %v274
        %v276 = vrot.slane %v275, 2
        %v277 = vadd.f32 %v275, %v276
        %v278 = vrot.slane %v277, 1
        %v279 = vadd.f32 %v277, %v278
        %s280 = vtos %v279
        %v281 = vstv %s280
        %282 = vst [vmem:[%s218] sm:$0xff] %v281
        %s283 = sand.u32 %s100, 1
        %s284 = scalar_lea.sflag [#allocation4], %s283
        %s285 = sand.u32 %s100, 1
        %s286 = smul.addr %s285, 8
        %s287 = scalar_lea.vmem [#allocation7], %s286
        // Predicated region
        $region37: #{tpu_custom_call.1} parent=27 // pred_check
          %p288 = pneg %p110
        $region38: #{tpu_custom_call.1} parent=27 // pred_check_branch
          %290 = sbr.rel (%p288) target = $region40
        $region39: #{tpu_custom_call.1} parent=27 // pred_region
          %s292 = ssub.s32 128, 128
          %293 = vsyncadd %s284, %s292
          %s294 = sadd.s32 %s27, %s26
          %s295 = smul.addr %s294, 128
          %s296 = scalar_lea.hbm %s2, %s295
          %s298 = sshll.u32 %s287, 4
          %s299 = int_to_ptr.vmem [resolvable:$true] %s298
          %301 = dma.vmem_to_hbm [thread:$0]  %s299, 128, %s296, %s284
        $region40: #{tpu_custom_call.1} parent=27 // pred_fallthru
          _
      $region28: #{tpu_custom_call.1} parent=5 // pred_fallthru
        _
      %p302 = scmp.le.s32.totalorder 2, %s17
      // Predicated region
      $region41: #{tpu_custom_call.1} parent=5 // pred_check
        %p303 = pneg %p302
      $region42: #{tpu_custom_call.1} parent=5 // pred_check_branch
        %305 = sbr.rel (%p303) target = $region44
      $region43: #{tpu_custom_call.1} parent=5 // pred_region
        %s306 = ssub.s32 %s17, 2
        // Predicated region
        $region45: #{tpu_custom_call.1} parent=43 // pred_check
          %p307 = pneg %p116
        $region46: #{tpu_custom_call.1} parent=43 // pred_check_branch
          %309 = sbr.rel (%p307) target = $region48
        $region47: #{tpu_custom_call.1} parent=43 // pred_region
          %s310 = sand.u32 %s101, 1
          %s311 = scalar_lea.sflag [#allocation4], %s310
          %s312 = sand.u32 %s101, 1
          %s313 = smul.addr %s312, 8
          %s314 = scalar_lea.vmem [#allocation7], %s313
          %315 = dma.done %s311, 128
        $region48: #{tpu_custom_call.1} parent=43 // pred_fallthru
          _
      $region44: #{tpu_custom_call.1} parent=5 // pred_fallthru
        _
    $region6: #{tpu_custom_call.1} parent=1 // loop_footer
      %s21 = sadd.s32 1, %s17
    $region7: #{tpu_custom_call.1} parent=1 // loop_footer_branch
      %16 = sbr.rel target = $region3
    $region8: #{tpu_custom_call.1} parent=1 // loop_exit
      _
    %316 = vsyncpa [#allocation3], 1
    %s317 = scalar_lea.sflag [#allocation3], 1
    %318 = vsyncpa %s317, 1
    %319 = vsyncpa [#allocation6], 1
    %s320 = scalar_lea.sflag [#allocation6], 1
    %321 = vsyncpa %s320, 1
    %322 = vsyncpa [#allocation4], 1
    %s323 = scalar_lea.sflag [#allocation4], 1
    %324 = vsyncpa %s323, 1

</llo_original>
